<compile_context>
chip_gen: v6e
topology: v6e:2x2x1
jax: 0.10.0
libtpu: 0.0.40
codegen_flags: <defaults>
</compile_context>

<pallas_src>
import numpy as np
import jax
import jax.numpy as jnp
from jax.experimental import pallas as pl
from jax.experimental.pallas import tpu as pltpu


def _round_up(x, m):
    return ((x + m - 1) // m) * m


# -------------------------- mask construction (glue, plain JAX) --------------------------
def get_mask(in_features, out_features, in_flow_features, mask_type=None):
    in_degrees = jnp.arange(in_features) % in_flow_features
    if mask_type == 'output':
        out_degrees = jnp.arange(out_features) % in_flow_features - 1
    else:
        out_degrees = jnp.arange(out_features) % in_flow_features
    # shape (out_features, in_features), same layout as the PyTorch nn.Linear weight
    return (out_degrees[:, None] >= in_degrees[None, :]).astype(jnp.float32)


# -------------------------- Pallas kernel: the whole MADE hot path --------------------------
def made_kernel(x_ref, w1_ref, b1_ref, w2_ref, b2_ref, w3_ref, b3_ref, out_ref):
    x = x_ref[...]                                   # (TB, Dp) f32
    Dp = x.shape[-1]

    # joiner: masked linear Dp -> Hp (bf16 MXU operands, f32 accumulation), ReLU
    h = jnp.dot(x.astype(jnp.bfloat16), w1_ref[...],
                preferred_element_type=jnp.float32) + b1_ref[...]
    h = jnp.maximum(h, 0.0)

    # trunk hidden: masked linear Hp -> Hp, ReLU
    h = jnp.dot(h.astype(jnp.bfloat16), w2_ref[...],
                preferred_element_type=jnp.float32) + b2_ref[...]
    h = jnp.maximum(h, 0.0)

    # fused output layer Hp -> 2*Dp  (m half in lanes [0,Dp), a half in lanes [Dp,2Dp))
    o = jnp.dot(h.astype(jnp.bfloat16), w3_ref[...],
                preferred_element_type=jnp.float32) + b3_ref[...]          # (TB, 2*Dp)
    m = o[:, :Dp]
    a = o[:, Dp:]

    # two lane-aligned, full-width stores into the (TB, 2*Dp) slab: [ u | -a ]
    out_ref[:, :Dp] = (x - m) * jnp.exp(-a)
    out_ref[:, Dp:] = -a


def made_forward(x, kparams, num_inputs):
    """x: (B, D) float32. Returns (u, -a), each (B, D) float32."""
    B, D = x.shape
    assert D == num_inputs
    Dp, Hp = kparams['w1t'].shape

    # batch tiling: multiple of 8 sublanes, capped at 256 rows per tile
    TB = min(256, _round_up(max(B, 1), 8))
    Bp = _round_up(B, TB)

    # zero-pad x to (Bp, Dp); padded rows/lanes produce exact zeros and are sliced off
    x_p = jnp.pad(x, ((0, Bp - B), (0, Dp - D)))

    resident = lambda shape: pl.BlockSpec(shape, lambda i: (0, 0))  # fetched once, stays in VMEM

    slab = pl.pallas_call(
        made_kernel,
        out_shape=jax.ShapeDtypeStruct((Bp, 2 * Dp), jnp.float32),
        grid=(Bp // TB,),
        in_specs=[pl.BlockSpec((TB, Dp), lambda i: (i, 0)),
                  resident((Dp, Hp)), resident((1, Hp)),
                  resident((Hp, Hp)), resident((1, Hp)),
                  resident((Hp, 2 * Dp)), resident((1, 2 * Dp))],
        out_specs=pl.BlockSpec((TB, 2 * Dp), lambda i: (i, 0)),
        compiler_params=pltpu.CompilerParams(dimension_semantics=("parallel",)),
    )(x_p, kparams['w1t'], kparams['b1'], kparams['w2t'], kparams['b2'],
      kparams['w3t'], kparams['b3'])

    u = slab[:B, :D]
    neg_a = slab[:B, Dp:Dp + D]
    return u, neg_a


# -------------------------- deterministic parameter init (PyTorch-style uniform) ------------
def init_made_params(key, num_inputs, num_hidden):
    """Logical (unpadded, f32) parameters: pre-masked, pre-transposed to (in, out)."""
    def linear_init(k, fan_in, fan_out):
        k_w, k_b = jax.random.split(k)
        bound = 1.0 / np.sqrt(fan_in)
        w = jax.random.uniform(k_w, (fan_out, fan_in), jnp.float32, -bound, bound)
        b = jax.random.uniform(k_b, (fan_out,), jnp.float32, -bound, bound)
        return w, b

    k1, k2, k3 = jax.random.split(key, 3)
    w1, b1 = linear_init(k1, num_inputs, num_hidden)        # joiner
    w2, b2 = linear_init(k2, num_hidden, num_hidden)        # trunk hidden
    w3, b3 = linear_init(k3, num_hidden, 2 * num_inputs)    # trunk output

    input_mask = get_mask(num_inputs, num_hidden, num_inputs, mask_type='input')
    hidden_mask = get_mask(num_hidden, num_hidden, num_inputs)
    output_mask = get_mask(num_hidden, 2 * num_inputs, num_inputs, mask_type='output')

    return {
        'w1t': (w1 * input_mask).T,  'b1': b1.reshape(1, -1),
        'w2t': (w2 * hidden_mask).T, 'b2': b2.reshape(1, -1),
        'w3t': (w3 * output_mask).T, 'b3': b3.reshape(1, -1),   # (H, 2D): [m half | a half]
    }


def pack_params_for_kernel(params, num_inputs, num_hidden):
    """Pad D/H to 128-lane boundaries (once, at init), fuse the output layer with the
    m half in lanes [0,Dp) and the a half in lanes [Dp,2Dp), and cast weights to bf16."""
    D, H = num_inputs, num_hidden
    Dp = _round_up(D, 128)
    Hp = _round_up(H, 128)

    def pad2(a, shape):
        return jnp.zeros(shape, a.dtype).at[:a.shape[0], :a.shape[1]].set(a)

    w1t = pad2(params['w1t'], (Dp, Hp)).astype(jnp.bfloat16)
    b1 = pad2(params['b1'], (1, Hp))
    w2t = pad2(params['w2t'], (Hp, Hp)).astype(jnp.bfloat16)
    b2 = pad2(params['b2'], (1, Hp))

    w3t = jnp.zeros((Hp, 2 * Dp), jnp.float32)
    w3t = w3t.at[:H, :D].set(params['w3t'][:, :D])          # m half
    w3t = w3t.at[:H, Dp:Dp + D].set(params['w3t'][:, D:])   # a half
    w3t = w3t.astype(jnp.bfloat16)
    b3 = jnp.zeros((1, 2 * Dp), jnp.float32)
    b3 = b3.at[:, :D].set(params['b3'][:, :D])
    b3 = b3.at[:, Dp:Dp + D].set(params['b3'][:, D:])

    return {'w1t': w1t, 'b1': b1, 'w2t': w2t, 'b2': b2, 'w3t': w3t, 'b3': b3}


# -------------------------- pure-JAX references for verification -----------------------------
def made_reference(x, kparams, num_inputs):
    """Mirrors the kernel math exactly (same padding + bf16 matmul inputs, f32 accum)."""
    B, D = x.shape
    Dp, Hp = kparams['w1t'].shape
    x_p = jnp.pad(x, ((0, 0), (0, Dp - D)))
    h = jnp.dot(x_p.astype(jnp.bfloat16), kparams['w1t'],
                preferred_element_type=jnp.float32) + kparams['b1']
    h = jnp.maximum(h, 0.0)
    h = jnp.dot(h.astype(jnp.bfloat16), kparams['w2t'],
                preferred_element_type=jnp.float32) + kparams['b2']
    h = jnp.maximum(h, 0.0)
    o = jnp.dot(h.astype(jnp.bfloat16), kparams['w3t'],
                preferred_element_type=jnp.float32) + kparams['b3']
    m, a = o[:, :Dp], o[:, Dp:]
    u = (x_p - m) * jnp.exp(-a)
    return u[:, :D], -a[:, :D]


def made_reference_f32(x, params):
    """Full-precision reference matching the original PyTorch module."""
    D = x.shape[1]
    h = jnp.maximum(x @ params['w1t'] + params['b1'], 0.0)
    h = jnp.maximum(h @ params['w2t'] + params['b2'], 0.0)
    o = h @ params['w3t'] + params['b3']
    m, a = o[:, :D], o[:, D:]
    return (x - m) * jnp.exp(-a), -a


if __name__ == "__main__":
    num_inputs, num_hidden, batch = 8, 32, 8

    key = jax.random.PRNGKey(0)
    k_param, k_x = jax.random.split(key)
    params = init_made_params(k_param, num_inputs, num_hidden)
    kparams = pack_params_for_kernel(params, num_inputs, num_hidden)
    x = jax.random.normal(k_x, (batch, num_inputs), jnp.float32)

    u, neg_a = made_forward(x, kparams, num_inputs)
    jax.block_until_ready((u, neg_a))

    # tight check against a reference that mirrors the kernel's bf16-matmul math
    u_ref, neg_a_ref = made_reference(x, kparams, num_inputs)
    np.testing.assert_allclose(np.asarray(u), np.asarray(u_ref), rtol=1e-4, atol=1e-4)
    np.testing.assert_allclose(np.asarray(neg_a), np.asarray(neg_a_ref), rtol=1e-4, atol=1e-4)

    # looser sanity check against the full-f32 module semantics (bf16 matmul inputs
    # introduce ~1% deviation; accumulation stays f32)
    u_f32, neg_a_f32 = made_reference_f32(x, params)
    np.testing.assert_allclose(np.asarray(u), np.asarray(u_f32), rtol=1e-1, atol=1e-1)
    np.testing.assert_allclose(np.asarray(neg_a), np.asarray(neg_a_f32), rtol=1e-1, atol=1e-1)

    # TODO(synk): 'inverse' mode (sequential per-column autoregressive sampling loop)
    # is inherently serial in the feature dim and is not implemented as a kernel.
    print("KERNEL_OK")
</pallas_src>

<mosaic_0001>
module attributes {stable_mosaic.version = 11 : i64} {
  func.func @made_kernel(%arg0: i32, %arg1: memref<8x128xf32, #tpu.memory_space<vmem>>, %arg2: memref<128x128xbf16, #tpu.memory_space<vmem>>, %arg3: memref<1x128xf32, #tpu.memory_space<vmem>>, %arg4: memref<128x128xbf16, #tpu.memory_space<vmem>>, %arg5: memref<1x128xf32, #tpu.memory_space<vmem>>, %arg6: memref<128x256xbf16, #tpu.memory_space<vmem>>, %arg7: memref<1x256xf32, #tpu.memory_space<vmem>>, %arg8: memref<8x256xf32, #tpu.memory_space<vmem>>) attributes {dimension_semantics = [#tpu.dimension_semantics<parallel>], iteration_bounds = array<i64: 1>, scalar_prefetch = 0 : i64, scratch_operands = 0 : i64, tpu.core_type = #tpu.core_type<tc>, window_params = [{transform_indices = @transform_0, window_bounds = array<i64: 8, 128>}, {pipeline_mode = #tpu.pipeline_mode<synchronous>, transform_indices = @transform_1, window_bounds = array<i64: 128, 128>}, {pipeline_mode = #tpu.pipeline_mode<synchronous>, transform_indices = @transform_2, window_bounds = array<i64: 1, 128>}, {pipeline_mode = #tpu.pipeline_mode<synchronous>, transform_indices = @transform_3, window_bounds = array<i64: 128, 128>}, {pipeline_mode = #tpu.pipeline_mode<synchronous>, transform_indices = @transform_4, window_bounds = array<i64: 1, 128>}, {pipeline_mode = #tpu.pipeline_mode<synchronous>, transform_indices = @transform_5, window_bounds = array<i64: 128, 256>}, {pipeline_mode = #tpu.pipeline_mode<synchronous>, transform_indices = @transform_6, window_bounds = array<i64: 1, 256>}, {transform_indices = @transform_7, window_bounds = array<i64: 8, 256>}]} {
    %c0 = arith.constant 0 : index
    %c0_0 = arith.constant 0 : index
    %0 = vector.load %arg1[%c0, %c0_0] : memref<8x128xf32, #tpu.memory_space<vmem>>, vector<8x128xf32>
    %1 = arith.truncf %0 : vector<8x128xf32> to vector<8x128xbf16>
    %c0_1 = arith.constant 0 : index
    %c0_2 = arith.constant 0 : index
    %2 = vector.load %arg2[%c0_1, %c0_2] : memref<128x128xbf16, #tpu.memory_space<vmem>>, vector<128x128xbf16>
    %cst = arith.constant dense<0.000000e+00> : vector<8x128xf32>
    %3 = tpu.matmul %1, %2, %cst {dimension_numbers = #tpu.dot_dimension_numbers<[1], [0], [0], [1], [0, 0, 1, 1], [], []>} : vector<8x128xbf16>, vector<128x128xbf16>, vector<8x128xf32> -> vector<8x128xf32>
    %c0_3 = arith.constant 0 : index
    %c0_4 = arith.constant 0 : index
    %4 = vector.load %arg3[%c0_3, %c0_4] : memref<1x128xf32, #tpu.memory_space<vmem>>, vector<1x128xf32>
    %5 = vector.broadcast %4 : vector<1x128xf32> to vector<8x128xf32>
    %6 = arith.addf %3, %5 : vector<8x128xf32>
    %cst_5 = arith.constant 0.000000e+00 : f32
    %7 = vector.broadcast %cst_5 : f32 to vector<8x128xf32>
    %8 = arith.maximumf %6, %7 : vector<8x128xf32>
    %9 = arith.truncf %8 : vector<8x128xf32> to vector<8x128xbf16>
    %c0_6 = arith.constant 0 : index
    %c0_7 = arith.constant 0 : index
    %10 = vector.load %arg4[%c0_6, %c0_7] : memref<128x128xbf16, #tpu.memory_space<vmem>>, vector<128x128xbf16>
    %cst_8 = arith.constant dense<0.000000e+00> : vector<8x128xf32>
    %11 = tpu.matmul %9, %10, %cst_8 {dimension_numbers = #tpu.dot_dimension_numbers<[1], [0], [0], [1], [0, 0, 1, 1], [], []>} : vector<8x128xbf16>, vector<128x128xbf16>, vector<8x128xf32> -> vector<8x128xf32>
    %c0_9 = arith.constant 0 : index
    %c0_10 = arith.constant 0 : index
    %12 = vector.load %arg5[%c0_9, %c0_10] : memref<1x128xf32, #tpu.memory_space<vmem>>, vector<1x128xf32>
    %13 = vector.broadcast %12 : vector<1x128xf32> to vector<8x128xf32>
    %14 = arith.addf %11, %13 : vector<8x128xf32>
    %cst_11 = arith.constant 0.000000e+00 : f32
    %15 = vector.broadcast %cst_11 : f32 to vector<8x128xf32>
    %16 = arith.maximumf %14, %15 : vector<8x128xf32>
    %17 = arith.truncf %16 : vector<8x128xf32> to vector<8x128xbf16>
    %c0_12 = arith.constant 0 : index
    %c0_13 = arith.constant 0 : index
    %18 = vector.load %arg6[%c0_12, %c0_13] : memref<128x256xbf16, #tpu.memory_space<vmem>>, vector<128x256xbf16>
    %cst_14 = arith.constant dense<0.000000e+00> : vector<8x256xf32>
    %19 = tpu.matmul %17, %18, %cst_14 {dimension_numbers = #tpu.dot_dimension_numbers<[1], [0], [0], [1], [0, 0, 1, 1], [], []>} : vector<8x128xbf16>, vector<128x256xbf16>, vector<8x256xf32> -> vector<8x256xf32>
    %c0_15 = arith.constant 0 : index
    %c0_16 = arith.constant 0 : index
    %20 = vector.load %arg7[%c0_15, %c0_16] : memref<1x256xf32, #tpu.memory_space<vmem>>, vector<1x256xf32>
    %21 = vector.broadcast %20 : vector<1x256xf32> to vector<8x256xf32>
    %22 = arith.addf %19, %21 : vector<8x256xf32>
    %23 = vector.extract_strided_slice %22 {offsets = [0, 0], sizes = [8, 128], strides = [1, 1]} : vector<8x256xf32> to vector<8x128xf32>
    %24 = vector.extract_strided_slice %22 {offsets = [0, 128], sizes = [8, 128], strides = [1, 1]} : vector<8x256xf32> to vector<8x128xf32>
    %25 = arith.subf %0, %23 : vector<8x128xf32>
    %cst_17 = arith.constant 0.000000e+00 : f32
    %26 = vector.broadcast %cst_17 : f32 to vector<8x128xf32>
    %27 = arith.subf %26, %24 : vector<8x128xf32>
    %28 = math.exp %27 : vector<8x128xf32>
    %29 = arith.mulf %25, %28 : vector<8x128xf32>
    %c0_18 = arith.constant 0 : index
    %c0_19 = arith.constant 0 : index
    %30 = vector.load %arg8[%c0_18, %c0_19] : memref<8x256xf32, #tpu.memory_space<vmem>>, vector<8x128xf32>
    tpu.vector_store %arg8[%c0_18, %c0_19], %29 {strides = array<i32>} : memref<8x256xf32, #tpu.memory_space<vmem>>, vector<8x128xf32>,
    %cst_20 = arith.constant 0.000000e+00 : f32
    %31 = vector.broadcast %cst_20 : f32 to vector<8x128xf32>
    %32 = arith.subf %31, %24 : vector<8x128xf32>
    %c0_21 = arith.constant 0 : index
    %c128 = arith.constant 128 : index
    %33 = vector.load %arg8[%c0_21, %c128] : memref<8x256xf32, #tpu.memory_space<vmem>>, vector<8x128xf32>
    tpu.vector_store %arg8[%c0_21, %c128], %32 {strides = array<i32>} : memref<8x256xf32, #tpu.memory_space<vmem>>, vector<8x128xf32>,
    return
  }
  func.func @transform_0(%arg0: i32) -> (i32, i32) {
    %c0_i32 = arith.constant 0 : i32
    %c0_i32_0 = arith.constant 0 : i32
    return %arg0, %c0_i32 : i32, i32
  }
  func.func @transform_1(%arg0: i32) -> (i32, i32) {
    %c0_i32 = arith.constant 0 : i32
    %c0_i32_0 = arith.constant 0 : i32
    %c0_i32_1 = arith.constant 0 : i32
    return %c0_i32, %c0_i32_0 : i32, i32
  }
  func.func @transform_2(%arg0: i32) -> (i32, i32) {
    %c0_i32 = arith.constant 0 : i32
    %c0_i32_0 = arith.constant 0 : i32
    %c0_i32_1 = arith.constant 0 : i32
    return %c0_i32, %c0_i32_0 : i32, i32
  }
  func.func @transform_3(%arg0: i32) -> (i32, i32) {
    %c0_i32 = arith.constant 0 : i32
    %c0_i32_0 = arith.constant 0 : i32
    %c0_i32_1 = arith.constant 0 : i32
    return %c0_i32, %c0_i32_0 : i32, i32
  }
  func.func @transform_4(%arg0: i32) -> (i32, i32) {
    %c0_i32 = arith.constant 0 : i32
    %c0_i32_0 = arith.constant 0 : i32
    %c0_i32_1 = arith.constant 0 : i32
    return %c0_i32, %c0_i32_0 : i32, i32
  }
  func.func @transform_5(%arg0: i32) -> (i32, i32) {
    %c0_i32 = arith.constant 0 : i32
    %c0_i32_0 = arith.constant 0 : i32
    %c0_i32_1 = arith.constant 0 : i32
    return %c0_i32, %c0_i32_0 : i32, i32
  }
  func.func @transform_6(%arg0: i32) -> (i32, i32) {
    %c0_i32 = arith.constant 0 : i32
    %c0_i32_0 = arith.constant 0 : i32
    %c0_i32_1 = arith.constant 0 : i32
    return %c0_i32, %c0_i32_0 : i32, i32
  }
  func.func @transform_7(%arg0: i32) -> (i32, i32) {
    %c0_i32 = arith.constant 0 : i32
    %c0_i32_0 = arith.constant 0 : i32
    return %arg0, %c0_i32 : i32, i32
  }
}

</mosaic_0001>

<llo_original>
// kernel: tpu_custom_call.1
$region0: #{tpu_custom_call.1}
  #allocation0 [shape = 'u32[]', space=smem, size = 0x4, offset = 0x4, fixed_abs, tag = 'smem constant byte address 0x4 - core index']
  #allocation1 [shape = 'u32[144,128]{1,0:T(1,128)}', space=vmem, size = 0x12000, scoped, tag = 'internal scratch']
  %s0 = inlined_call_operand.hbm [shape: f32[8,128], index: 0, kind: input, shape index: {}]
  %s1 = inlined_call_operand.hbm [shape: bf16[128,128], index: 1, kind: input, shape index: {}]
  %s2 = inlined_call_operand.vmem [shape: f32[1,128], index: 2, kind: input, shape index: {}]
  %s3 = inlined_call_operand.hbm [shape: bf16[128,128], index: 3, kind: input, shape index: {}]
  %s4 = inlined_call_operand.vmem [shape: f32[1,128], index: 4, kind: input, shape index: {}]
  %s5 = inlined_call_operand.hbm [shape: bf16[128,256], index: 5, kind: input, shape index: {}]
  %s6 = inlined_call_operand.vmem [shape: f32[1,256], index: 6, kind: input, shape index: {}]
  %s7 = inlined_call_operand.hbm [shape: f32[8,256], index: 7, kind: output, shape index: {}]
  %s8 = sld [smem:[#allocation0]]
  $region54: #{tpu_custom_call.1} parent=0
    _
  %s10 = ssub.s32 1, %s8
  %s11 = scalar_select 0, %s10, %s8
  $region1: #{tpu_custom_call.1} parent=0
    #allocation2 [shape = 'u8[4096]{0}', space=vmem, size = 0x1000, scoped, tag = 'input window, operand 0, single buffered']
    #allocation3 [shape = 's32[1]{0}', space=sflag, size = 0x4, scoped, tag = 'scoped memory for tpu_custom_call.1']
    #allocation4 [shape = 's32[1]{0}', space=sflag, size = 0x4, scoped, tag = 'scoped memory for tpu_custom_call.1']
    #allocation5 [shape = 'u8[32768]{0}', space=vmem, size = 0x8000, scoped, tag = 'input window, operand 1, single buffered']
    #allocation6 [shape = 's32[1]{0}', space=sflag, size = 0x4, scoped, tag = 'scoped memory for tpu_custom_call.1']
    #allocation7 [shape = 'u8[32768]{0}', space=vmem, size = 0x8000, scoped, tag = 'input window, operand 3, single buffered']
    #allocation8 [shape = 'u8[65536]{0}', space=vmem, size = 0x10000, scoped, tag = 'input window, operand 5, single buffered']
    #allocation9 [shape = 's32[1]{0}', space=sflag, size = 0x4, scoped, tag = 'scoped memory for tpu_custom_call.1']
    #allocation10 [shape = 'u8[8192]{0}', space=vmem, size = 0x2000, scoped, tag = 'output window, operand 0, single buffered']
    %12 = vsyncpa [#allocation3], 0
    %13 = vsyncpa [#allocation6], 0
    %14 = vsyncpa [#allocation9], 0
    %15 = vsyncpa [#allocation4], 0
    // Predicated region
    $region2: #{tpu_custom_call.1} parent=1 // pred_check
      _
    $region3: #{tpu_custom_call.1} parent=1 // pred_check_branch
      %17 = sbr.rel (0) target = $region5
    $region4: #{tpu_custom_call.1} parent=1 // pred_region
      %s19 = ssub.s32 128, 128
      %20 = vsyncadd [#allocation3], %s19
      %s22 = sshll.u32 [#allocation2], 4
      %s23 = int_to_ptr.vmem [resolvable:$true] %s22
      %25 = dma.hbm_to_vmem [thread:$0]  %s0, 128, %s23, [#allocation3]
    $region5: #{tpu_custom_call.1} parent=1 // pred_fallthru
      _
    // Predicated region
    $region6: #{tpu_custom_call.1} parent=1 // pred_check
      _
    $region7: #{tpu_custom_call.1} parent=1 // pred_check_branch
      %27 = sbr.rel (0) target = $region9
    $region8: #{tpu_custom_call.1} parent=1 // pred_region
      %s29 = ssub.s32 1024, 1024
      %30 = vsyncadd [#allocation6], %s29
      %s31 = sshll.u32 [#allocation5], 4
      %s32 = int_to_ptr.vmem [resolvable:$true] %s31
      %37 = dma.hbm_to_vmem [thread:$0]  %s1, 1024, %s32, [#allocation6], 64, 64, 4
    $region9: #{tpu_custom_call.1} parent=1 // pred_fallthru
      _
    // Predicated region
    $region10: #{tpu_custom_call.1} parent=1 // pred_check
      _
    $region11: #{tpu_custom_call.1} parent=1 // pred_check_branch
      %39 = sbr.rel (0) target = $region13
    $region12: #{tpu_custom_call.1} parent=1 // pred_region
      _
    $region13: #{tpu_custom_call.1} parent=1 // pred_fallthru
      _
    // Predicated region
    $region14: #{tpu_custom_call.1} parent=1 // pred_check
      _
    $region15: #{tpu_custom_call.1} parent=1 // pred_check_branch
      %41 = sbr.rel (0) target = $region17
    $region16: #{tpu_custom_call.1} parent=1 // pred_region
      %s43 = ssub.s32 1024, 1024
      %44 = vsyncadd [#allocation6], %s43
      %s45 = sshll.u32 [#allocation7], 4
      %s46 = int_to_ptr.vmem [resolvable:$true] %s45
      %51 = dma.hbm_to_vmem [thread:$0]  %s3, 1024, %s46, [#allocation6], 64, 64, 4
    $region17: #{tpu_custom_call.1} parent=1 // pred_fallthru
      _
    // Predicated region
    $region18: #{tpu_custom_call.1} parent=1 // pred_check
      _
    $region19: #{tpu_custom_call.1} parent=1 // pred_check_branch
      %53 = sbr.rel (0) target = $region21
    $region20: #{tpu_custom_call.1} parent=1 // pred_region
      _
    $region21: #{tpu_custom_call.1} parent=1 // pred_fallthru
      _
    // Predicated region
    $region22: #{tpu_custom_call.1} parent=1 // pred_check
      _
    $region23: #{tpu_custom_call.1} parent=1 // pred_check_branch
      %55 = sbr.rel (0) target = $region25
    $region24: #{tpu_custom_call.1} parent=1 // pred_region
      %s57 = ssub.s32 2048, 2048
      %58 = vsyncadd [#allocation9], %s57
      %s59 = sshll.u32 [#allocation8], 4
      %s60 = int_to_ptr.vmem [resolvable:$true] %s59
      %65 = dma.hbm_to_vmem [thread:$0]  %s5, 2048, %s60, [#allocation9], 128, 128, 8
    $region25: #{tpu_custom_call.1} parent=1 // pred_fallthru
      _
    // Predicated region
    $region26: #{tpu_custom_call.1} parent=1 // pred_check
      _
    $region27: #{tpu_custom_call.1} parent=1 // pred_check_branch
      %67 = sbr.rel (0) target = $region29
    $region28: #{tpu_custom_call.1} parent=1 // pred_region
      _
    $region29: #{tpu_custom_call.1} parent=1 // pred_fallthru
      _
    // Predicated region
    $region30: #{tpu_custom_call.1} parent=1 // pred_check
      _
    $region31: #{tpu_custom_call.1} parent=1 // pred_check_branch
      %69 = sbr.rel (0) target = $region33
    $region32: #{tpu_custom_call.1} parent=1 // pred_region
      %70 = dma.done [#allocation3], 128
    $region33: #{tpu_custom_call.1} parent=1 // pred_fallthru
      _
    // Predicated region
    $region34: #{tpu_custom_call.1} parent=1 // pred_check
      _
    $region35: #{tpu_custom_call.1} parent=1 // pred_check_branch
      %72 = sbr.rel (0) target = $region37
    $region36: #{tpu_custom_call.1} parent=1 // pred_region
      %73 = dma.done [#allocation6], 1024
    $region37: #{tpu_custom_call.1} parent=1 // pred_fallthru
      _
    // Predicated region
    $region38: #{tpu_custom_call.1} parent=1 // pred_check
      _
    $region39: #{tpu_custom_call.1} parent=1 // pred_check_branch
      %75 = sbr.rel (0) target = $region41
    $region40: #{tpu_custom_call.1} parent=1 // pred_region
      %76 = dma.done [#allocation6], 1024
    $region41: #{tpu_custom_call.1} parent=1 // pred_fallthru
      _
    // Predicated region
    $region42: #{tpu_custom_call.1} parent=1 // pred_check
      _
    $region43: #{tpu_custom_call.1} parent=1 // pred_check_branch
      %78 = sbr.rel (0) target = $region45
    $region44: #{tpu_custom_call.1} parent=1 // pred_region
      %79 = dma.done [#allocation9], 2048
    $region45: #{tpu_custom_call.1} parent=1 // pred_fallthru
      _
    %v81 = vld [vmem:[#allocation2] sm:$0xff]
    %v82 = vpack.c.bf16 %v81, %v81
    %v83 = vld [vmem:[#allocation5] sm:$0xf]
    %v84 = vld [vmem:[#allocation5 + $0x4] sm:$0xf]
    %v85 = vld [vmem:[#allocation5 + $0x8] sm:$0xf]
    %v86 = vld [vmem:[#allocation5 + $0xc] sm:$0xf]
    %v87 = vld [vmem:[#allocation5 + $0x10] sm:$0xf]
    %v88 = vld [vmem:[#allocation5 + $0x14] sm:$0xf]
    %v89 = vld [vmem:[#allocation5 + $0x18] sm:$0xf]
    %v90 = vld [vmem:[#allocation5 + $0x1c] sm:$0xf]
    %v91 = vld [vmem:[#allocation5 + $0x20] sm:$0xf]
    %v92 = vld [vmem:[#allocation5 + $0x24] sm:$0xf]
    %v93 = vld [vmem:[#allocation5 + $0x28] sm:$0xf]
    %v94 = vld [vmem:[#allocation5 + $0x2c] sm:$0xf]
    %v95 = vld [vmem:[#allocation5 + $0x30] sm:$0xf]
    %v96 = vld [vmem:[#allocation5 + $0x34] sm:$0xf]
    %v97 = vld [vmem:[#allocation5 + $0x38] sm:$0xf]
    %v98 = vld [vmem:[#allocation5 + $0x3c] sm:$0xf]
    %v99 = vld [vmem:[%s2] sm:$0x1]
    %v101 = vlaneseq
    %v102 = vshrl.u32 %v101, 7
    %v103 = vsub.s32 0, %v102
    %v104 = vrot.slane %v99, %v103
    %v122 = vunpack.c.l.b16 %v83
    %v123 = vunpack.c.l.b16 %v84
    %v124 = vunpack.c.l.b16 %v85
    %v125 = vunpack.c.l.b16 %v86
    %v126 = vunpack.c.l.b16 %v87
    %v127 = vunpack.c.l.b16 %v88
    %v128 = vunpack.c.l.b16 %v89
    %v129 = vunpack.c.l.b16 %v90
    %v130 = vunpack.c.l.b16 %v91
    %v131 = vunpack.c.l.b16 %v92
    %v132 = vunpack.c.l.b16 %v93
    %v133 = vunpack.c.l.b16 %v94
    %v134 = vunpack.c.l.b16 %v95
    %v135 = vunpack.c.l.b16 %v96
    %v136 = vunpack.c.l.b16 %v97
    %v137 = vunpack.c.l.b16 %v98
    %v138 = vpack.c.b16 %v123, %v122
    %v139 = vpack.c.b16 %v125, %v124
    %v140 = vpack.c.b16 %v127, %v126
    %v141 = vpack.c.b16 %v129, %v128
    %v142 = vpack.c.b16 %v131, %v130
    %v143 = vpack.c.b16 %v133, %v132
    %v144 = vpack.c.b16 %v135, %v134
    %v145 = vpack.c.b16 %v137, %v136
    %154 = vmatprep.subr.bf16.mxu0 0
    %155 = vmatpush1.bf16.msra.mxu0 %v145
    %156 = vmatprep.subr.bf16.mxu0 0
    %157 = vmatpush1.bf16.msra.mxu0 %v144
    %158 = vmatprep.subr.bf16.mxu0 0
    %159 = vmatpush1.bf16.msra.mxu0 %v143
    %160 = vmatprep.subr.bf16.mxu0 0
    %161 = vmatpush1.bf16.msra.mxu0 %v142
    %162 = vmatprep.subr.bf16.mxu0 0
    %163 = vmatpush1.bf16.msra.mxu0 %v141
    %164 = vmatprep.subr.bf16.mxu0 0
    %165 = vmatpush1.bf16.msra.mxu0 %v140
    %166 = vmatprep.subr.bf16.mxu0 0
    %167 = vmatpush1.bf16.msra.mxu0 %v139
    %168 = vmatprep.subr.bf16.mxu0 0
    %169 = vmatpush1.bf16.msra.mxu0 %v138
    %170 = vmatprep.subr.bf16.mxu0 0
    %171 = vmatpush2.bf16.msra.mxu0 0
    %172 = vmatprep.subr.bf16.mxu0 0
    %173 = vmatpush2.bf16.msra.mxu0 0
    %174 = vmatprep.subr.bf16.mxu0 0
    %175 = vmatpush2.bf16.msra.mxu0 0
    %176 = vmatprep.subr.bf16.mxu0 0
    %177 = vmatpush2.bf16.msra.mxu0 0
    %178 = vmatprep.subr.bf16.mxu0 0
    %179 = vmatpush2.bf16.msra.mxu0 0
    %180 = vmatprep.subr.bf16.mxu0 0
    %181 = vmatpush2.bf16.msra.mxu0 0
    %182 = vmatprep.subr.bf16.mxu0 0
    %183 = vmatpush2.bf16.msra.mxu0 0
    %184 = vmatprep.subr.bf16.mxu0 0
    %185 = vmatpush2.bf16.msra.mxu0 0
    %186 = vmatprep.mubr.bf16.mxu0 0
    %187 = vmatmul.mubr.bf16.gmra.mxu0 %v82
    %v188 = vpop.f32.mrf.mxu0
    %v189 = vadd.f32 %v104, %v188
    %v190 = vpop.f32.mrf.mxu0
    %v191 = vpop.f32.mrf.mxu0
    %v192 = vpop.f32.mrf.mxu0
    %193 = vdwg.mxu0
    %v194 = vmax.f32 %v189, 0.0
    %v195 = vpack.c.bf16 %v194, %v194
    %v196 = vld [vmem:[#allocation7] sm:$0xf]
    %v197 = vld [vmem:[#allocation7 + $0x4] sm:$0xf]
    %v198 = vld [vmem:[#allocation7 + $0x8] sm:$0xf]
    %v199 = vld [vmem:[#allocation7 + $0xc] sm:$0xf]
    %v200 = vld [vmem:[#allocation7 + $0x10] sm:$0xf]
    %v201 = vld [vmem:[#allocation7 + $0x14] sm:$0xf]
    %v202 = vld [vmem:[#allocation7 + $0x18] sm:$0xf]
    %v203 = vld [vmem:[#allocation7 + $0x1c] sm:$0xf]
    %v204 = vld [vmem:[#allocation7 + $0x20] sm:$0xf]
    %v205 = vld [vmem:[#allocation7 + $0x24] sm:$0xf]
    %v206 = vld [vmem:[#allocation7 + $0x28] sm:$0xf]
    %v207 = vld [vmem:[#allocation7 + $0x2c] sm:$0xf]
    %v208 = vld [vmem:[#allocation7 + $0x30] sm:$0xf]
    %v209 = vld [vmem:[#allocation7 + $0x34] sm:$0xf]
    %v210 = vld [vmem:[#allocation7 + $0x38] sm:$0xf]
    %v211 = vld [vmem:[#allocation7 + $0x3c] sm:$0xf]
    %v212 = vld [vmem:[%s4] sm:$0x1]
    %v214 = vlaneseq
    %v215 = vshrl.u32 %v214, 7
    %v216 = vsub.s32 0, %v215
    %v217 = vrot.slane %v212, %v216
    %v235 = vunpack.c.l.b16 %v196
    %v236 = vunpack.c.l.b16 %v197
    %v237 = vunpack.c.l.b16 %v198
    %v238 = vunpack.c.l.b16 %v199
    %v239 = vunpack.c.l.b16 %v200
    %v240 = vunpack.c.l.b16 %v201
    %v241 = vunpack.c.l.b16 %v202
    %v242 = vunpack.c.l.b16 %v203
    %v243 = vunpack.c.l.b16 %v204
    %v244 = vunpack.c.l.b16 %v205
    %v245 = vunpack.c.l.b16 %v206
    %v246 = vunpack.c.l.b16 %v207
    %v247 = vunpack.c.l.b16 %v208
    %v248 = vunpack.c.l.b16 %v209
    %v249 = vunpack.c.l.b16 %v210
    %v250 = vunpack.c.l.b16 %v211
    %v251 = vpack.c.b16 %v236, %v235
    %v252 = vpack.c.b16 %v238, %v237
    %v253 = vpack.c.b16 %v240, %v239
    %v254 = vpack.c.b16 %v242, %v241
    %v255 = vpack.c.b16 %v244, %v243
    %v256 = vpack.c.b16 %v246, %v245
    %v257 = vpack.c.b16 %v248, %v247
    %v258 = vpack.c.b16 %v250, %v249
    %267 = vmatprep.subr.bf16.mxu0 0
    %268 = vmatpush1.bf16.msra.mxu0 %v258
    %269 = vmatprep.subr.bf16.mxu0 0
    %270 = vmatpush1.bf16.msra.mxu0 %v257
    %271 = vmatprep.subr.bf16.mxu0 0
    %272 = vmatpush1.bf16.msra.mxu0 %v256
    %273 = vmatprep.subr.bf16.mxu0 0
    %274 = vmatpush1.bf16.msra.mxu0 %v255
    %275 = vmatprep.subr.bf16.mxu0 0
    %276 = vmatpush1.bf16.msra.mxu0 %v254
    %277 = vmatprep.subr.bf16.mxu0 0
    %278 = vmatpush1.bf16.msra.mxu0 %v253
    %279 = vmatprep.subr.bf16.mxu0 0
    %280 = vmatpush1.bf16.msra.mxu0 %v252
    %281 = vmatprep.subr.bf16.mxu0 0
    %282 = vmatpush1.bf16.msra.mxu0 %v251
    %283 = vmatprep.subr.bf16.mxu0 0
    %284 = vmatpush2.bf16.msra.mxu0 0
    %285 = vmatprep.subr.bf16.mxu0 0
    %286 = vmatpush2.bf16.msra.mxu0 0
    %287 = vmatprep.subr.bf16.mxu0 0
    %288 = vmatpush2.bf16.msra.mxu0 0
    %289 = vmatprep.subr.bf16.mxu0 0
    %290 = vmatpush2.bf16.msra.mxu0 0
    %291 = vmatprep.subr.bf16.mxu0 0
    %292 = vmatpush2.bf16.msra.mxu0 0
    %293 = vmatprep.subr.bf16.mxu0 0
    %294 = vmatpush2.bf16.msra.mxu0 0
    %295 = vmatprep.subr.bf16.mxu0 0
    %296 = vmatpush2.bf16.msra.mxu0 0
    %297 = vmatprep.subr.bf16.mxu0 0
    %298 = vmatpush2.bf16.msra.mxu0 0
    %299 = vmatprep.mubr.bf16.mxu0 0
    %300 = vmatmul.mubr.bf16.gmra.mxu0 %v195
    %v301 = vpop.f32.mrf.mxu0
    %v302 = vadd.f32 %v217, %v301
    %v303 = vpop.f32.mrf.mxu0
    %v304 = vpop.f32.mrf.mxu0
    %v305 = vpop.f32.mrf.mxu0
    %306 = vdwg.mxu0
    %v307 = vmax.f32 %v302, 0.0
    %v308 = vpack.c.bf16 %v307, %v307
    %v309 = vld [vmem:[#allocation8] sm:$0xff]
    %v310 = vld [vmem:[#allocation8 + $0x8] sm:$0xff]
    %v311 = vld [vmem:[#allocation8 + $0x10] sm:$0xff]
    %v312 = vld [vmem:[#allocation8 + $0x18] sm:$0xff]
    %v313 = vld [vmem:[#allocation8 + $0x20] sm:$0xff]
    %v314 = vld [vmem:[#allocation8 + $0x28] sm:$0xff]
    %v315 = vld [vmem:[#allocation8 + $0x30] sm:$0xff]
    %v316 = vld [vmem:[#allocation8 + $0x38] sm:$0xff]
    %v317 = vld [vmem:[#allocation8 + $0x40] sm:$0xff]
    %v318 = vld [vmem:[#allocation8 + $0x48] sm:$0xff]
    %v319 = vld [vmem:[#allocation8 + $0x50] sm:$0xff]
    %v320 = vld [vmem:[#allocation8 + $0x58] sm:$0xff]
    %v321 = vld [vmem:[#allocation8 + $0x60] sm:$0xff]
    %v322 = vld [vmem:[#allocation8 + $0x68] sm:$0xff]
    %v323 = vld [vmem:[#allocation8 + $0x70] sm:$0xff]
    %v324 = vld [vmem:[#allocation8 + $0x78] sm:$0xff]
    %v325 = vld [vmem:[%s6] sm:$0x3]
    %v327 = vlaneseq
    %v328 = vshrl.u32 %v327, 7
    %v329 = vsub.s32 0, %v328
    %v330 = vrot.slane %v325, %v329
    %v331 = vlaneseq
    %v332 = vshrl.u32 %v331, 7
    %v333 = vsub.s32 1, %v332
    %v334 = vrot.slane %v325, %v333
    %v353 = vunpack.c.l.b16 %v309
    %v354 = vunpack.c.h.b16 %v309
    %v355 = vunpack.c.l.b16 %v310
    %v356 = vunpack.c.h.b16 %v310
    %v357 = vunpack.c.l.b16 %v311
    %v358 = vunpack.c.h.b16 %v311
    %v359 = vunpack.c.l.b16 %v312
    %v360 = vunpack.c.h.b16 %v312
    %v361 = vunpack.c.l.b16 %v313
    %v362 = vunpack.c.h.b16 %v313
    %v363 = vunpack.c.l.b16 %v314
    %v364 = vunpack.c.h.b16 %v314
    %v365 = vunpack.c.l.b16 %v315
    %v366 = vunpack.c.h.b16 %v315
    %v367 = vunpack.c.l.b16 %v316
    %v368 = vunpack.c.h.b16 %v316
    %v369 = vunpack.c.l.b16 %v317
    %v370 = vunpack.c.h.b16 %v317
    %v371 = vunpack.c.l.b16 %v318
    %v372 = vunpack.c.h.b16 %v318
    %v373 = vunpack.c.l.b16 %v319
    %v374 = vunpack.c.h.b16 %v319
    %v375 = vunpack.c.l.b16 %v320
    %v376 = vunpack.c.h.b16 %v320
    %v377 = vunpack.c.l.b16 %v321
    %v378 = vunpack.c.h.b16 %v321
    %v379 = vunpack.c.l.b16 %v322
    %v380 = vunpack.c.h.b16 %v322
    %v381 = vunpack.c.l.b16 %v323
    %v382 = vunpack.c.h.b16 %v323
    %v383 = vunpack.c.l.b16 %v324
    %v384 = vunpack.c.h.b16 %v324
    %v385 = vpack.c.b16 %v355, %v353
    %v386 = vpack.c.b16 %v356, %v354
    %v387 = vpack.c.b16 %v359, %v357
    %v388 = vpack.c.b16 %v360, %v358
    %v389 = vpack.c.b16 %v363, %v361
    %v390 = vpack.c.b16 %v364, %v362
    %v391 = vpack.c.b16 %v367, %v365
    %v392 = vpack.c.b16 %v368, %v366
    %v393 = vpack.c.b16 %v371, %v369
    %v394 = vpack.c.b16 %v372, %v370
    %v395 = vpack.c.b16 %v375, %v373
    %v396 = vpack.c.b16 %v376, %v374
    %v397 = vpack.c.b16 %v379, %v377
    %v398 = vpack.c.b16 %v380, %v378
    %v399 = vpack.c.b16 %v383, %v381
    %v400 = vpack.c.b16 %v384, %v382
    %417 = vmatprep.subr.bf16.mxu0 %v400
    %418 = vmatpush1.bf16.msra.mxu0 %v399
    %419 = vmatprep.subr.bf16.mxu0 %v398
    %420 = vmatpush1.bf16.msra.mxu0 %v397
    %421 = vmatprep.subr.bf16.mxu0 %v396
    %422 = vmatpush1.bf16.msra.mxu0 %v395
    %423 = vmatprep.subr.bf16.mxu0 %v394
    %424 = vmatpush1.bf16.msra.mxu0 %v393
    %425 = vmatprep.subr.bf16.mxu0 %v392
    %426 = vmatpush1.bf16.msra.mxu0 %v391
    %427 = vmatprep.subr.bf16.mxu0 %v390
    %428 = vmatpush1.bf16.msra.mxu0 %v389
    %429 = vmatprep.subr.bf16.mxu0 %v388
    %430 = vmatpush1.bf16.msra.mxu0 %v387
    %431 = vmatprep.subr.bf16.mxu0 %v386
    %432 = vmatpush1.bf16.msra.mxu0 %v385
    %433 = vmatprep.subr.bf16.mxu0 0
    %434 = vmatpush2.bf16.msra.mxu0 0
    %435 = vmatprep.subr.bf16.mxu0 0
    %436 = vmatpush2.bf16.msra.mxu0 0
    %437 = vmatprep.subr.bf16.mxu0 0
    %438 = vmatpush2.bf16.msra.mxu0 0
    %439 = vmatprep.subr.bf16.mxu0 0
    %440 = vmatpush2.bf16.msra.mxu0 0
    %441 = vmatprep.subr.bf16.mxu0 0
    %442 = vmatpush2.bf16.msra.mxu0 0
    %443 = vmatprep.subr.bf16.mxu0 0
    %444 = vmatpush2.bf16.msra.mxu0 0
    %445 = vmatprep.subr.bf16.mxu0 0
    %446 = vmatpush2.bf16.msra.mxu0 0
    %447 = vmatprep.subr.bf16.mxu0 0
    %448 = vmatpush2.bf16.msra.mxu0 0
    %449 = vmatprep.mubr.bf16.mxu0 0
    %450 = vmatmul.mubr.bf16.gmra.mxu0 %v308
    %v451 = vpop.f32.mrf.mxu0
    %v452 = vadd.f32 %v330, %v451
    %v453 = vpop.f32.mrf.mxu0
    %v454 = vadd.f32 %v334, %v453
    %v455 = vpop.f32.mrf.mxu0
    %v456 = vpop.f32.mrf.mxu0
    %457 = vdwg.mxu0
    %v458 = vsub.f32 %v81, %v452
    %v459 = vsub.f32 0.0, %v454
    %v460 = vmul.f32 %v459, 1.442695
    %v461 = vpow.pop %v460
    %v462 = vmul.f32 %v458, %v461
    %463 = vst [vmem:[#allocation10] sm:$0xff] %v462
    %464 = vst [vmem:[#allocation10 + $0x8] sm:$0xff] %v459
    // Predicated region
    $region46: #{tpu_custom_call.1} parent=1 // pred_check
      _
    $region47: #{tpu_custom_call.1} parent=1 // pred_check_branch
      %466 = sbr.rel (0) target = $region49
    $region48: #{tpu_custom_call.1} parent=1 // pred_region
      %s468 = ssub.s32 256, 256
      %469 = vsyncadd [#allocation4], %s468
      %s471 = sshll.u32 [#allocation10], 4
      %s472 = int_to_ptr.vmem [resolvable:$true] %s471
      %474 = dma.vmem_to_hbm [thread:$0]  %s472, 256, %s7, [#allocation4]
    $region49: #{tpu_custom_call.1} parent=1 // pred_fallthru
      _
    // Predicated region
    $region50: #{tpu_custom_call.1} parent=1 // pred_check
      _
    $region51: #{tpu_custom_call.1} parent=1 // pred_check_branch
      %476 = sbr.rel (0) target = $region53
    $region52: #{tpu_custom_call.1} parent=1 // pred_region
      %477 = dma.done [#allocation4], 256
    $region53: #{tpu_custom_call.1} parent=1 // pred_fallthru
      _
    %478 = vsyncpa [#allocation3], 1
    %479 = vsyncpa [#allocation6], 1
    %480 = vsyncpa [#allocation9], 1
    %481 = vsyncpa [#allocation4], 1

</llo_original>
